<compile_context>
chip_gen: v5e
topology: v5e:2x2
jax: 0.10.0
libtpu: 0.0.40
codegen_flags: <defaults>
</compile_context>

<pallas_src>
import functools

import jax
import jax.numpy as jnp
from jax.experimental import pallas as pl
from jax.experimental.pallas import tpu as pltpu


def _gap_kernel(x_ref, o_ref, *, inv_hw):
    # x_ref: (BR, HW) input tile  ->  o_ref: (1, BR) lane-dense output tile.
    x = x_ref[...].astype(jnp.float32)
    s = jnp.sum(x, axis=-1, keepdims=True)            # (BR, 1) row sums (XLU)
    m = s * inv_hw                                    # mean per row (VPU)
    # Column -> row relayout so the writeback is an unmasked, lane-dense store.
    o_ref[...] = m.reshape(1, m.shape[0]).astype(o_ref.dtype)


def _choose_block_rows(rows, hw):
    """Pick the row-tile size BR (static, shapes are known at trace time).

    Constraints:
      * input block (BR, hw): BR % 8 == 0, or BR == rows (full extent)
      * output block (1, BR): BR % 128 == 0, or BR == rows (full extent)
    Sizing: ~4 MiB per input tile (f32 accounting, lanes padded to 128) so
    double-buffering stays well inside scoped VMEM on v5e/v6e/v7x.
    """
    hw_pad = ((hw + 127) // 128) * 128                # lane padding
    target_tile_bytes = 4 * 1024 * 1024
    br = target_tile_bytes // (hw_pad * 4)
    br = (br // 128) * 128                            # keep output lane-aligned
    br = max(128, min(br, 4096))
    if rows <= br:
        return rows                                   # single full block
    return br
    # TODO(synk): for tiny spatial sizes (e.g. 7x7) fold H into the row axis
    # to avoid 49->128 lane padding; not needed for correctness.


@functools.partial(jax.jit, static_argnames=("flatten",))
def fast_global_avg_pool2d(x, flatten=False):
    n, c, h, w = x.shape
    rows = n * c
    hw = h * w
    x2d = x.reshape(rows, hw)

    br = _choose_block_rows(rows, hw)
    grid = (pl.cdiv(rows, br),)

    kernel = functools.partial(_gap_kernel, inv_hw=1.0 / float(hw))

    out = pl.pallas_call(
        kernel,
        out_shape=jax.ShapeDtypeStruct((1, rows), x.dtype),
        grid_spec=pltpu.PrefetchScalarGridSpec(
            num_scalar_prefetch=0,
            grid=grid,
            in_specs=[pl.BlockSpec((br, hw), lambda i: (i, 0))],
            out_specs=pl.BlockSpec((1, br), lambda i: (0, i)),
        ),
        compiler_params=pltpu.CompilerParams(
            # Row tiles are independent -> shard across both v7x TensorCores.
            dimension_semantics=("parallel",),
            # Allow larger tiles than the 16/32 MiB scoped defaults, while
            # leaving headroom on v7x (64 MiB physical).
            vmem_limit_bytes=48 * 1024 * 1024,
        ),
    )(x2d)

    if flatten:
        return out.reshape(n, c)
    return out.reshape(n, c, 1, 1)


def _reference(x, flatten=False):
    n, c = x.shape[0], x.shape[1]
    m = x.reshape(n, c, -1).mean(axis=-1)
    if flatten:
        return m
    return m.reshape(n, c, 1, 1)


if __name__ == "__main__":
    key = jax.random.PRNGKey(0)

    # Small shape consistent with the module (N=2, C=4, H=W=16).
    x = jax.random.normal(key, (2, 4, 16, 16), dtype=jnp.float32)

    # flatten=False path (default module config)
    y = jax.block_until_ready(fast_global_avg_pool2d(x, flatten=False))
    y_ref = _reference(x, flatten=False)
    assert y.shape == (2, 4, 1, 1), y.shape
    assert jnp.allclose(y, y_ref, atol=1e-5, rtol=1e-5)

    # flatten=True path
    yf = jax.block_until_ready(fast_global_avg_pool2d(x, flatten=True))
    yf_ref = _reference(x, flatten=True)
    assert yf.shape == (2, 4), yf.shape
    assert jnp.allclose(yf, yf_ref, atol=1e-5, rtol=1e-5)

    # Medium shape exercising the tiled path with a partial final row block
    # (rows = 16*515 = 8240, BR = 4096 -> 3 grid steps).
    x2 = jax.random.normal(jax.random.PRNGKey(0), (16, 515, 7, 7),
                           dtype=jnp.float32)
    y2 = jax.block_until_ready(fast_global_avg_pool2d(x2, flatten=True))
    y2_ref = _reference(x2, flatten=True)
    assert y2.shape == (16, 515), y2.shape
    assert jnp.allclose(y2, y2_ref, atol=1e-5, rtol=1e-5)

    print("KERNEL_OK")
</pallas_src>

<mosaic_0001>
module attributes {stable_mosaic.version = 11 : i64} {
  func.func @_gap_kernel(%arg0: i32, %arg1: memref<8x256xf32, #tpu.memory_space<vmem>>, %arg2: memref<1x8xf32, #tpu.memory_space<vmem>>) attributes {dimension_semantics = [#tpu.dimension_semantics<parallel>], iteration_bounds = array<i64: 1>, scalar_prefetch = 0 : i64, scratch_operands = 0 : i64, tpu.core_type = #tpu.core_type<tc>, window_params = [{transform_indices = @transform_0, window_bounds = array<i64: 8, 256>}, {transform_indices = @transform_1, window_bounds = array<i64: 1, 8>}]} {
    %c0 = arith.constant 0 : index
    %c0_0 = arith.constant 0 : index
    %0 = vector.load %arg1[%c0, %c0_0] : memref<8x256xf32, #tpu.memory_space<vmem>>, vector<8x256xf32>
    %cst = arith.constant dense<0.000000e+00> : vector<8xf32>
    %1 = vector.multi_reduction <add>, %0, %cst [1] : vector<8x256xf32> to vector<8xf32>
    %2 = vector.shape_cast %1 : vector<8xf32> to vector<8x1xf32>
    %cst_1 = arith.constant 3.906250e-03 : f32
    %3 = vector.broadcast %cst_1 : f32 to vector<8x1xf32>
    %4 = arith.mulf %2, %3 : vector<8x1xf32>
    %5 = vector.shape_cast %4 : vector<8x1xf32> to vector<1x8xf32>
    %c0_2 = arith.constant 0 : index
    %c0_3 = arith.constant 0 : index
    %6 = vector.load %arg2[%c0_2, %c0_3] : memref<1x8xf32, #tpu.memory_space<vmem>>, vector<1x8xf32>
    tpu.vector_store %arg2[%c0_2, %c0_3], %5 {strides = array<i32>} : memref<1x8xf32, #tpu.memory_space<vmem>>, vector<1x8xf32>,
    return
  }
  func.func @transform_0(%arg0: i32) -> (i32, i32) {
    %c0_i32 = arith.constant 0 : i32
    %c0_i32_0 = arith.constant 0 : i32
    return %arg0, %c0_i32 : i32, i32
  }
  func.func @transform_1(%arg0: i32) -> (i32, i32) {
    %c0_i32 = arith.constant 0 : i32
    %c0_i32_0 = arith.constant 0 : i32
    return %c0_i32, %arg0 : i32, i32
  }
}

</mosaic_0001>

<llo_original>
// kernel: fast_global_avg_pool2d.1
$region0: #{fast_global_avg_pool2d.1}
  #allocation0 [shape = 'u32[]', space=smem, size = 0x4, offset = 0x4, fixed_abs, tag = 'smem constant byte address 0x4 - core index']
  #allocation1 [shape = 'u32[72,128]{1,0:T(1,128)}', space=vmem, size = 0x9000, scoped, tag = 'internal scratch']
  %s0 = inlined_call_operand.vmem [shape: f32[8,256], index: 0, kind: input, shape index: {}]
  %s1 = inlined_call_operand.vmem [shape: f32[1,8], index: 1, kind: output, shape index: {}]
  %s2 = sld [smem:[#allocation0]]
  $region14: #{fast_global_avg_pool2d.1} parent=0
    _
  %s4 = ssub.s32 1, %s2
  %s5 = scalar_select 0, %s4, %s2
  // Predicated region
  $region2: #{fast_global_avg_pool2d.1} parent=0 // pred_check
    _
  $region3: #{fast_global_avg_pool2d.1} parent=0 // pred_check_branch
    %7 = sbr.rel (0) target = $region5
  $region4: #{fast_global_avg_pool2d.1} parent=0 // pred_region
    _
  $region5: #{fast_global_avg_pool2d.1} parent=0 // pred_fallthru
    _
  %v8 = vld [vmem:[%s0] sm:$0xff]
  %v9 = vld [vmem:[%s0 + $0x8] sm:$0xff]
  %v10 = vadd.f32 %v8, %v9
  %11 = vadd.xlane.f32.xlu0 %v10
  %v12 = vpop.xlane.xlu0 %11
  %v13 = vmul.f32 %v12, 0.00390625
  %v15 = vlaneseq
  %v16 = vand.u32 %v15, 127
  %v17 = vperm.slane %v13, %v16
  %vm19 = vcmask 57344
  %20 = vst.msk [vmem:[%s1] sm:$0x1] %vm19, %v17
  // Predicated region
  $region6: #{fast_global_avg_pool2d.1} parent=0 // pred_check
    _
  $region7: #{fast_global_avg_pool2d.1} parent=0 // pred_check_branch
    %22 = sbr.rel (0) target = $region9
  $region8: #{fast_global_avg_pool2d.1} parent=0 // pred_region
    _
  $region9: #{fast_global_avg_pool2d.1} parent=0 // pred_fallthru
    _
  // Predicated region
  $region10: #{fast_global_avg_pool2d.1} parent=0 // pred_check
    _
  $region11: #{fast_global_avg_pool2d.1} parent=0 // pred_check_branch
    %24 = sbr.rel (0) target = $region13
  $region12: #{fast_global_avg_pool2d.1} parent=0 // pred_region
    _
  $region13: #{fast_global_avg_pool2d.1} parent=0 // pred_fallthru
    _

</llo_original>
